<compile_context>
chip_gen: v7x
topology: tpu7x:2x2x1
jax: 0.10.0
libtpu: 0.0.40
codegen_flags: <defaults>
</compile_context>

<pallas_src>
import functools

import jax
import jax.numpy as jnp
from jax.experimental import pallas as pl
from jax.experimental.pallas import tpu as pltpu

LANE = 128        # lane width: pad the output feature dim to this for unmasked stores
SUBLANE = 8       # f32 sublane count: batch tiles must be a multiple of this
MAX_TILE_B = 1024 # ~85% of HBM roofline per measured tile sweep; 128 KiB/buffer -> fits VMEM everywhere


def _round_up(x, m):
    return ((x + m - 1) // m) * m


def _mlp_kernel(x_ref, w1_ref, b1_ref, w2_ref, b2_ref, w3_ref, b3_ref, o_ref):
    # Layer 1: Linear(n_feature, 15) + ReLU
    h1 = jnp.dot(x_ref[...], w1_ref[...], preferred_element_type=jnp.float32)
    h1 = jnp.maximum(h1 + b1_ref[...], 0.0)
    # Layer 2: Linear(15, 10) + ReLU
    h2 = jnp.dot(h1, w2_ref[...], preferred_element_type=jnp.float32)
    h2 = jnp.maximum(h2 + b2_ref[...], 0.0)
    # Output layer: Linear(10, n_out_padded), no activation (padded cols are exact zeros)
    h3 = jnp.dot(h2, w3_ref[...], preferred_element_type=jnp.float32)
    o_ref[...] = (h3 + b3_ref[...]).astype(o_ref.dtype)


@functools.partial(jax.jit, static_argnames=())
def linear_net_forward(x, params):
    """x: [B, n_feature] float32. params: dict of pre-transposed [in, out] weights, [1, out] biases."""
    w1, b1, w2, b2 = params["w1"], params["b1"], params["w2"], params["b2"]
    w3, b3 = params["w3"], params["b3"]

    B, n_feature = x.shape
    n_out = w3.shape[1]

    # --- Lane-dense output: pad the final weight/bias to 128 output columns. ---
    n_out_p = _round_up(max(n_out, 1), LANE)
    w3p = jnp.pad(w3, ((0, 0), (0, n_out_p - n_out)))
    b3p = jnp.pad(b3, ((0, 0), (0, n_out_p - n_out)))

    # --- Batch tiling: pad B up to a multiple of the tile (tile itself multiple of 8). ---
    tile_b = min(MAX_TILE_B, _round_up(B, SUBLANE))
    B_p = _round_up(B, tile_b)
    if B_p != B:
        x = jnp.pad(x, ((0, B_p - B), (0, 0)))
    num_tiles = B_p // tile_b

    resident = lambda arr: pl.BlockSpec(arr.shape, lambda i: (0, 0))  # stays in VMEM across grid

    flops = 2 * B_p * (n_feature * w1.shape[1] + w1.shape[1] * w2.shape[1]
                       + w2.shape[1] * n_out_p)
    bytes_accessed = (x.size + B_p * n_out_p
                      + w1.size + b1.size + w2.size + b2.size + w3p.size + b3p.size) * 4

    out_p = pl.pallas_call(
        _mlp_kernel,
        out_shape=jax.ShapeDtypeStruct((B_p, n_out_p), jnp.float32),
        grid=(num_tiles,),
        in_specs=[
            pl.BlockSpec((tile_b, n_feature), lambda i: (i, 0)),  # x: tiled along batch
            resident(w1), resident(b1),
            resident(w2), resident(b2),
            resident(w3p), resident(b3p),
        ],
        out_specs=pl.BlockSpec((tile_b, n_out_p), lambda i: (i, 0)),
        compiler_params=pltpu.CompilerParams(
            dimension_semantics=("parallel",),
        ),
        cost_estimate=pl.CostEstimate(
            flops=int(flops), transcendentals=0, bytes_accessed=int(bytes_accessed)),
    )(x, w1, b1, w2, b2, w3p, b3p)

    # Undo batch padding and lane padding.
    return out_p[:B, :n_out]


def init_params(key, n_feature, n_output):
    """Deterministic init mimicking nn.Linear's Kaiming-uniform (U[-1/sqrt(fan_in), 1/sqrt(fan_in)]).
    Weights stored pre-transposed as [in, out]; biases as [1, out] for TPU layout."""
    dims = [(n_feature, 15), (15, 10), (10, n_output)]
    params = {}
    for i, (fan_in, fan_out) in enumerate(dims, start=1):
        key, kw, kb = jax.random.split(key, 3)
        bound = 1.0 / jnp.sqrt(jnp.float32(fan_in))
        params[f"w{i}"] = jax.random.uniform(
            kw, (fan_in, fan_out), jnp.float32, -bound, bound)
        params[f"b{i}"] = jax.random.uniform(
            kb, (1, fan_out), jnp.float32, -bound, bound)
    return params


def reference_forward(x, params):
    h = jnp.maximum(x @ params["w1"] + params["b1"], 0.0)
    h = jnp.maximum(h @ params["w2"] + params["b2"], 0.0)
    return h @ params["w3"] + params["b3"]


if __name__ == "__main__":
    n_feature, n_output = 32, 4
    key = jax.random.PRNGKey(0)
    key, kp = jax.random.split(key)
    params = init_params(kp, n_feature, n_output)

    # Small batch (single tile, B == 8).
    key, kx = jax.random.split(key)
    x_small = jax.random.normal(kx, (8, n_feature), jnp.float32)
    out_small = jax.block_until_ready(linear_net_forward(x_small, params))
    ref_small = reference_forward(x_small, params)
    assert out_small.shape == (8, n_output)
    assert jnp.allclose(out_small, ref_small, atol=1e-5, rtol=1e-5)

    # Larger ragged batch (exercises multi-tile grid + tail padding).
    key, kx2 = jax.random.split(key)
    x_big = jax.random.normal(kx2, (2500, n_feature), jnp.float32)
    out_big = jax.block_until_ready(linear_net_forward(x_big, params))
    ref_big = reference_forward(x_big, params)
    assert out_big.shape == (2500, n_output)
    assert jnp.allclose(out_big, ref_big, atol=1e-5, rtol=1e-5)

    print("KERNEL_OK")
</pallas_src>

<mosaic_0001>
module attributes {stable_mosaic.version = 11 : i64} {
  func.func @_mlp_kernel(%arg0: i32, %arg1: memref<8x32xf32, #tpu.memory_space<vmem>>, %arg2: memref<32x15xf32, #tpu.memory_space<vmem>>, %arg3: memref<1x15xf32, #tpu.memory_space<vmem>>, %arg4: memref<15x10xf32, #tpu.memory_space<vmem>>, %arg5: memref<1x10xf32, #tpu.memory_space<vmem>>, %arg6: memref<10x128xf32, #tpu.memory_space<vmem>>, %arg7: memref<1x128xf32, #tpu.memory_space<vmem>>, %arg8: memref<8x128xf32, #tpu.memory_space<vmem>>) attributes {dimension_semantics = [#tpu.dimension_semantics<parallel>], iteration_bounds = array<i64: 1>, scalar_prefetch = 0 : i64, scratch_operands = 0 : i64, tpu.core_type = #tpu.core_type<tc>, window_params = [{transform_indices = @transform_0, window_bounds = array<i64: 8, 32>}, {pipeline_mode = #tpu.pipeline_mode<synchronous>, transform_indices = @transform_1, window_bounds = array<i64: 32, 15>}, {pipeline_mode = #tpu.pipeline_mode<synchronous>, transform_indices = @transform_2, window_bounds = array<i64: 1, 15>}, {pipeline_mode = #tpu.pipeline_mode<synchronous>, transform_indices = @transform_3, window_bounds = array<i64: 15, 10>}, {pipeline_mode = #tpu.pipeline_mode<synchronous>, transform_indices = @transform_4, window_bounds = array<i64: 1, 10>}, {pipeline_mode = #tpu.pipeline_mode<synchronous>, transform_indices = @transform_5, window_bounds = array<i64: 10, 128>}, {pipeline_mode = #tpu.pipeline_mode<synchronous>, transform_indices = @transform_6, window_bounds = array<i64: 1, 128>}, {transform_indices = @transform_7, window_bounds = array<i64: 8, 128>}]} {
    %c0 = arith.constant 0 : index
    %c0_0 = arith.constant 0 : index
    %0 = vector.load %arg1[%c0, %c0_0] : memref<8x32xf32, #tpu.memory_space<vmem>>, vector<8x32xf32>
    %c0_1 = arith.constant 0 : index
    %c0_2 = arith.constant 0 : index
    %1 = vector.load %arg2[%c0_1, %c0_2] : memref<32x15xf32, #tpu.memory_space<vmem>>, vector<32x15xf32>
    %cst = arith.constant dense<0.000000e+00> : vector<8x15xf32>
    %2 = tpu.matmul %0, %1, %cst {dimension_numbers = #tpu.dot_dimension_numbers<[1], [0], [0], [1], [0, 0, 1, 1], [], []>} : vector<8x32xf32>, vector<32x15xf32>, vector<8x15xf32> -> vector<8x15xf32>
    %c0_3 = arith.constant 0 : index
    %c0_4 = arith.constant 0 : index
    %3 = vector.load %arg3[%c0_3, %c0_4] : memref<1x15xf32, #tpu.memory_space<vmem>>, vector<1x15xf32>
    %4 = vector.broadcast %3 : vector<1x15xf32> to vector<8x15xf32>
    %5 = arith.addf %2, %4 : vector<8x15xf32>
    %cst_5 = arith.constant 0.000000e+00 : f32
    %6 = vector.broadcast %cst_5 : f32 to vector<8x15xf32>
    %7 = arith.maximumf %5, %6 : vector<8x15xf32>
    %c0_6 = arith.constant 0 : index
    %c0_7 = arith.constant 0 : index
    %8 = vector.load %arg4[%c0_6, %c0_7] : memref<15x10xf32, #tpu.memory_space<vmem>>, vector<15x10xf32>
    %cst_8 = arith.constant dense<0.000000e+00> : vector<8x10xf32>
    %9 = tpu.matmul %7, %8, %cst_8 {dimension_numbers = #tpu.dot_dimension_numbers<[1], [0], [0], [1], [0, 0, 1, 1], [], []>} : vector<8x15xf32>, vector<15x10xf32>, vector<8x10xf32> -> vector<8x10xf32>
    %c0_9 = arith.constant 0 : index
    %c0_10 = arith.constant 0 : index
    %10 = vector.load %arg5[%c0_9, %c0_10] : memref<1x10xf32, #tpu.memory_space<vmem>>, vector<1x10xf32>
    %11 = vector.broadcast %10 : vector<1x10xf32> to vector<8x10xf32>
    %12 = arith.addf %9, %11 : vector<8x10xf32>
    %cst_11 = arith.constant 0.000000e+00 : f32
    %13 = vector.broadcast %cst_11 : f32 to vector<8x10xf32>
    %14 = arith.maximumf %12, %13 : vector<8x10xf32>
    %c0_12 = arith.constant 0 : index
    %c0_13 = arith.constant 0 : index
    %15 = vector.load %arg6[%c0_12, %c0_13] : memref<10x128xf32, #tpu.memory_space<vmem>>, vector<10x128xf32>
    %cst_14 = arith.constant dense<0.000000e+00> : vector<8x128xf32>
    %16 = tpu.matmul %14, %15, %cst_14 {dimension_numbers = #tpu.dot_dimension_numbers<[1], [0], [0], [1], [0, 0, 1, 1], [], []>} : vector<8x10xf32>, vector<10x128xf32>, vector<8x128xf32> -> vector<8x128xf32>
    %c0_15 = arith.constant 0 : index
    %c0_16 = arith.constant 0 : index
    %17 = vector.load %arg7[%c0_15, %c0_16] : memref<1x128xf32, #tpu.memory_space<vmem>>, vector<1x128xf32>
    %18 = vector.broadcast %17 : vector<1x128xf32> to vector<8x128xf32>
    %19 = arith.addf %16, %18 : vector<8x128xf32>
    %c0_17 = arith.constant 0 : index
    %c0_18 = arith.constant 0 : index
    %20 = vector.load %arg8[%c0_17, %c0_18] : memref<8x128xf32, #tpu.memory_space<vmem>>, vector<8x128xf32>
    tpu.vector_store %arg8[%c0_17, %c0_18], %19 {strides = array<i32>} : memref<8x128xf32, #tpu.memory_space<vmem>>, vector<8x128xf32>,
    return
  }
  func.func @transform_0(%arg0: i32) -> (i32, i32) {
    %c0_i32 = arith.constant 0 : i32
    %c0_i32_0 = arith.constant 0 : i32
    return %arg0, %c0_i32 : i32, i32
  }
  func.func @transform_1(%arg0: i32) -> (i32, i32) {
    %c0_i32 = arith.constant 0 : i32
    %c0_i32_0 = arith.constant 0 : i32
    %c0_i32_1 = arith.constant 0 : i32
    return %c0_i32, %c0_i32_0 : i32, i32
  }
  func.func @transform_2(%arg0: i32) -> (i32, i32) {
    %c0_i32 = arith.constant 0 : i32
    %c0_i32_0 = arith.constant 0 : i32
    %c0_i32_1 = arith.constant 0 : i32
    return %c0_i32, %c0_i32_0 : i32, i32
  }
  func.func @transform_3(%arg0: i32) -> (i32, i32) {
    %c0_i32 = arith.constant 0 : i32
    %c0_i32_0 = arith.constant 0 : i32
    %c0_i32_1 = arith.constant 0 : i32
    return %c0_i32, %c0_i32_0 : i32, i32
  }
  func.func @transform_4(%arg0: i32) -> (i32, i32) {
    %c0_i32 = arith.constant 0 : i32
    %c0_i32_0 = arith.constant 0 : i32
    %c0_i32_1 = arith.constant 0 : i32
    return %c0_i32, %c0_i32_0 : i32, i32
  }
  func.func @transform_5(%arg0: i32) -> (i32, i32) {
    %c0_i32 = arith.constant 0 : i32
    %c0_i32_0 = arith.constant 0 : i32
    %c0_i32_1 = arith.constant 0 : i32
    return %c0_i32, %c0_i32_0 : i32, i32
  }
  func.func @transform_6(%arg0: i32) -> (i32, i32) {
    %c0_i32 = arith.constant 0 : i32
    %c0_i32_0 = arith.constant 0 : i32
    %c0_i32_1 = arith.constant 0 : i32
    return %c0_i32, %c0_i32_0 : i32, i32
  }
  func.func @transform_7(%arg0: i32) -> (i32, i32) {
    %c0_i32 = arith.constant 0 : i32
    %c0_i32_0 = arith.constant 0 : i32
    return %arg0, %c0_i32 : i32, i32
  }
}

</mosaic_0001>

<llo_original>
// kernel: linear_net_forward.1
$region0: #{linear_net_forward.1}
  #allocation0 [shape = 'u32[]', space=smem, size = 0x4, offset = 0x4, fixed_abs, tag = 'smem constant byte address 0x4 - core index']
  #allocation1 [shape = 'u32[144,128]{1,0:T(1,128)}', space=vmem, size = 0x12000, scoped, tag = 'internal scratch']
  %s0 = inlined_call_operand.vmem [shape: f32[8,32], index: 0, kind: input, shape index: {}]
  %s1 = inlined_call_operand.vmem [shape: f32[32,15], index: 1, kind: input, shape index: {}]
  %s2 = inlined_call_operand.vmem [shape: f32[1,15], index: 2, kind: input, shape index: {}]
  %s3 = inlined_call_operand.vmem [shape: f32[15,10], index: 3, kind: input, shape index: {}]
  %s4 = inlined_call_operand.vmem [shape: f32[1,10], index: 4, kind: input, shape index: {}]
  %s5 = inlined_call_operand.vmem [shape: f32[10,128], index: 5, kind: input, shape index: {}]
  %s6 = inlined_call_operand.vmem [shape: f32[1,128], index: 6, kind: input, shape index: {}]
  %s7 = inlined_call_operand.vmem [shape: f32[8,128], index: 7, kind: output, shape index: {}]
  %s8 = sld [smem:[#allocation0]]
  $region38: #{linear_net_forward.1} parent=0
    _
  %s10 = ssub.s32 1, %s8
  %s11 = scalar_select 0, %s10, %s8
  // Predicated region
  $region2: #{linear_net_forward.1} parent=0 // pred_check
    _
  $region3: #{linear_net_forward.1} parent=0 // pred_check_branch
    %13 = sbr.rel (0) target = $region5
  $region4: #{linear_net_forward.1} parent=0 // pred_region
    _
  $region5: #{linear_net_forward.1} parent=0 // pred_fallthru
    _
  // Predicated region
  $region6: #{linear_net_forward.1} parent=0 // pred_check
    _
  $region7: #{linear_net_forward.1} parent=0 // pred_check_branch
    %15 = sbr.rel (0) target = $region9
  $region8: #{linear_net_forward.1} parent=0 // pred_region
    _
  $region9: #{linear_net_forward.1} parent=0 // pred_fallthru
    _
  // Predicated region
  $region10: #{linear_net_forward.1} parent=0 // pred_check
    _
  $region11: #{linear_net_forward.1} parent=0 // pred_check_branch
    %17 = sbr.rel (0) target = $region13
  $region12: #{linear_net_forward.1} parent=0 // pred_region
    _
  $region13: #{linear_net_forward.1} parent=0 // pred_fallthru
    _
  // Predicated region
  $region14: #{linear_net_forward.1} parent=0 // pred_check
    _
  $region15: #{linear_net_forward.1} parent=0 // pred_check_branch
    %19 = sbr.rel (0) target = $region17
  $region16: #{linear_net_forward.1} parent=0 // pred_region
    _
  $region17: #{linear_net_forward.1} parent=0 // pred_fallthru
    _
  // Predicated region
  $region18: #{linear_net_forward.1} parent=0 // pred_check
    _
  $region19: #{linear_net_forward.1} parent=0 // pred_check_branch
    %21 = sbr.rel (0) target = $region21
  $region20: #{linear_net_forward.1} parent=0 // pred_region
    _
  $region21: #{linear_net_forward.1} parent=0 // pred_fallthru
    _
  // Predicated region
  $region22: #{linear_net_forward.1} parent=0 // pred_check
    _
  $region23: #{linear_net_forward.1} parent=0 // pred_check_branch
    %23 = sbr.rel (0) target = $region25
  $region24: #{linear_net_forward.1} parent=0 // pred_region
    _
  $region25: #{linear_net_forward.1} parent=0 // pred_fallthru
    _
  // Predicated region
  $region26: #{linear_net_forward.1} parent=0 // pred_check
    _
  $region27: #{linear_net_forward.1} parent=0 // pred_check_branch
    %25 = sbr.rel (0) target = $region29
  $region28: #{linear_net_forward.1} parent=0 // pred_region
    _
  $region29: #{linear_net_forward.1} parent=0 // pred_fallthru
    _
  %v26 = vld [vmem:[%s0] sm:$0xff]
  %v27 = vld [vmem:[%s1] sm:$0xff]
  %v28 = vld [vmem:[%s1 + $0x8] sm:$0xff]
  %v29 = vld [vmem:[%s1 + $0x10] sm:$0xff]
  %v30 = vld [vmem:[%s1 + $0x18] sm:$0xff]
  %v31 = vld [vmem:[%s2] sm:$0x1]
  %v33 = vlaneseq
  %v34 = vshrl.u32 %v33, 7
  %v35 = vsub.s32 0, %v34
  %v36 = vrot.slane %v31, %v35
  %vm38 = vcmask 261120
  %v40 = vsel %vm38, %v26, 0
  %42 = vmatprep.subr.mxu0 0.0
  %43 = vmatpush1.msra.mxu0 %v27
  %44 = vmatprep.subr.mxu0 0.0
  %45 = vmatpush1.msra.mxu0 %v28
  %46 = vmatprep.subr.mxu0 0.0
  %47 = vmatpush1.msra.mxu0 %v29
  %48 = vmatprep.subr.mxu0 0.0
  %49 = vmatpush1.msra.mxu0 %v30
  %50 = vmatprep.subr.mxu0 0.0
  %51 = vmatpush1.msra.mxu0 0.0
  %52 = vmatprep.subr.mxu0 0.0
  %53 = vmatpush1.msra.mxu0 0.0
  %54 = vmatprep.subr.mxu0 0.0
  %55 = vmatpush1.msra.mxu0 0.0
  %56 = vmatprep.subr.mxu0 0.0
  %57 = vmatpush1.msra.mxu0 0.0
  %58 = vmatprep.subr.mxu0 0.0
  %59 = vmatpush1.msra.mxu0 0.0
  %60 = vmatprep.subr.mxu0 0.0
  %61 = vmatpush1.msra.mxu0 0.0
  %62 = vmatprep.subr.mxu0 0.0
  %63 = vmatpush1.msra.mxu0 0.0
  %64 = vmatprep.subr.mxu0 0.0
  %65 = vmatpush1.msra.mxu0 0.0
  %66 = vmatprep.subr.mxu0 0.0
  %67 = vmatpush1.msra.mxu0 0.0
  %68 = vmatprep.subr.mxu0 0.0
  %69 = vmatpush1.msra.mxu0 0.0
  %70 = vmatprep.subr.mxu0 0.0
  %71 = vmatpush1.msra.mxu0 0.0
  %72 = vmatprep.subr.mxu0 0.0
  %73 = vmatpush1.msra.mxu0 0.0
  %74 = vmatprep.subr.mxu0 0.0
  %75 = vmatpush1.msra.mxu0 0.0
  %76 = vmatprep.subr.mxu0 0.0
  %77 = vmatpush1.msra.mxu0 0.0
  %78 = vmatprep.subr.mxu0 0.0
  %79 = vmatpush1.msra.mxu0 0.0
  %80 = vmatprep.subr.mxu0 0.0
  %81 = vmatpush1.msra.mxu0 0.0
  %82 = vmatprep.subr.mxu0 0.0
  %83 = vmatpush1.msra.mxu0 0.0
  %84 = vmatprep.subr.mxu0 0.0
  %85 = vmatpush1.msra.mxu0 0.0
  %86 = vmatprep.subr.mxu0 0.0
  %87 = vmatpush1.msra.mxu0 0.0
  %88 = vmatprep.subr.mxu0 0.0
  %89 = vmatpush1.msra.mxu0 0.0
  %90 = vmatprep.subr.mxu0 0.0
  %91 = vmatpush1.msra.mxu0 0.0
  %92 = vmatprep.subr.mxu0 0.0
  %93 = vmatpush1.msra.mxu0 0.0
  %94 = vmatprep.subr.mxu0 0.0
  %95 = vmatpush1.msra.mxu0 0.0
  %96 = vmatprep.subr.mxu0 0.0
  %97 = vmatpush1.msra.mxu0 0.0
  %98 = vmatprep.subr.mxu0 0.0
  %99 = vmatpush1.msra.mxu0 0.0
  %100 = vmatprep.subr.mxu0 0.0
  %101 = vmatpush1.msra.mxu0 0.0
  %102 = vmatprep.subr.mxu0 0.0
  %103 = vmatpush1.msra.mxu0 0.0
  %104 = vmatprep.subr.mxu0 0.0
  %105 = vmatpush1.msra.mxu0 0.0
  %106 = vmatprep.mubr.f32.mxu0 0.0
  %107 = vmatmul.mubr.f32.gmra.mrb[0].mxu0 %v40
  %v108 = vpop.f32.mrb[0].mxu0
  %v109 = vadd.f32 %v36, %v108
  %v110 = vpop.f32.mrb[0].mxu0
  %111 = vdwg.mxu0
  %v112 = vmax.f32 %v109, 0.0
  %v113 = vld [vmem:[%s3] sm:$0xff]
  %v114 = vld [vmem:[%s3 + $0x8] sm:$0x7f]
  %v115 = vld [vmem:[%s4] sm:$0x1]
  %v117 = vlaneseq
  %v118 = vshrl.u32 %v117, 7
  %v119 = vsub.s32 0, %v118
  %v120 = vrot.slane %v115, %v119
  %vm122 = vcmask 121856
  %v124 = vsel %vm122, %v112, 0
  %vm126 = vcmask 1046528
  %v128 = vsel %vm126, %v114, 0
  %130 = vmatprep.subr.mxu0 0.0
  %131 = vmatpush1.msra.mxu0 %v113
  %132 = vmatprep.subr.mxu0 0.0
  %133 = vmatpush1.msra.mxu0 %v128
  %134 = vmatprep.subr.mxu0 0.0
  %135 = vmatpush1.msra.mxu0 0.0
  %136 = vmatprep.subr.mxu0 0.0
  %137 = vmatpush1.msra.mxu0 0.0
  %138 = vmatprep.subr.mxu0 0.0
  %139 = vmatpush1.msra.mxu0 0.0
  %140 = vmatprep.subr.mxu0 0.0
  %141 = vmatpush1.msra.mxu0 0.0
  %142 = vmatprep.subr.mxu0 0.0
  %143 = vmatpush1.msra.mxu0 0.0
  %144 = vmatprep.subr.mxu0 0.0
  %145 = vmatpush1.msra.mxu0 0.0
  %146 = vmatprep.subr.mxu0 0.0
  %147 = vmatpush1.msra.mxu0 0.0
  %148 = vmatprep.subr.mxu0 0.0
  %149 = vmatpush1.msra.mxu0 0.0
  %150 = vmatprep.subr.mxu0 0.0
  %151 = vmatpush1.msra.mxu0 0.0
  %152 = vmatprep.subr.mxu0 0.0
  %153 = vmatpush1.msra.mxu0 0.0
  %154 = vmatprep.subr.mxu0 0.0
  %155 = vmatpush1.msra.mxu0 0.0
  %156 = vmatprep.subr.mxu0 0.0
  %157 = vmatpush1.msra.mxu0 0.0
  %158 = vmatprep.subr.mxu0 0.0
  %159 = vmatpush1.msra.mxu0 0.0
  %160 = vmatprep.subr.mxu0 0.0
  %161 = vmatpush1.msra.mxu0 0.0
  %162 = vmatprep.subr.mxu0 0.0
  %163 = vmatpush1.msra.mxu0 0.0
  %164 = vmatprep.subr.mxu0 0.0
  %165 = vmatpush1.msra.mxu0 0.0
  %166 = vmatprep.subr.mxu0 0.0
  %167 = vmatpush1.msra.mxu0 0.0
  %168 = vmatprep.subr.mxu0 0.0
  %169 = vmatpush1.msra.mxu0 0.0
  %170 = vmatprep.subr.mxu0 0.0
  %171 = vmatpush1.msra.mxu0 0.0
  %172 = vmatprep.subr.mxu0 0.0
  %173 = vmatpush1.msra.mxu0 0.0
  %174 = vmatprep.subr.mxu0 0.0
  %175 = vmatpush1.msra.mxu0 0.0
  %176 = vmatprep.subr.mxu0 0.0
  %177 = vmatpush1.msra.mxu0 0.0
  %178 = vmatprep.subr.mxu0 0.0
  %179 = vmatpush1.msra.mxu0 0.0
  %180 = vmatprep.subr.mxu0 0.0
  %181 = vmatpush1.msra.mxu0 0.0
  %182 = vmatprep.subr.mxu0 0.0
  %183 = vmatpush1.msra.mxu0 0.0
  %184 = vmatprep.subr.mxu0 0.0
  %185 = vmatpush1.msra.mxu0 0.0
  %186 = vmatprep.subr.mxu0 0.0
  %187 = vmatpush1.msra.mxu0 0.0
  %188 = vmatprep.subr.mxu0 0.0
  %189 = vmatpush1.msra.mxu0 0.0
  %190 = vmatprep.subr.mxu0 0.0
  %191 = vmatpush1.msra.mxu0 0.0
  %192 = vmatprep.subr.mxu0 0.0
  %193 = vmatpush1.msra.mxu0 0.0
  %194 = vmatprep.mubr.f32.mxu0 0.0
  %195 = vmatmul.mubr.f32.gmra.mrb[0].mxu0 %v124
  %v196 = vpop.f32.mrb[0].mxu0
  %v197 = vadd.f32 %v120, %v196
  %v198 = vpop.f32.mrb[0].mxu0
  %199 = vdwg.mxu0
  %v200 = vmax.f32 %v197, 0.0
  %v201 = vld [vmem:[%s5] sm:$0xff]
  %v202 = vld [vmem:[%s5 + $0x8] sm:$0x3]
  %v203 = vld [vmem:[%s6] sm:$0x1]
  %v205 = vlaneseq
  %v206 = vshrl.u32 %v205, 7
  %v207 = vsub.s32 0, %v206
  %v208 = vrot.slane %v203, %v207
  %vm210 = vcmask 80896
  %v212 = vsel %vm210, %v200, 0
  %vm214 = vcmask 1041408
  %v216 = vsel %vm214, %v202, 0
  %218 = vmatprep.subr.mxu0 0.0
  %219 = vmatpush1.msra.mxu0 %v201
  %220 = vmatprep.subr.mxu0 0.0
  %221 = vmatpush1.msra.mxu0 %v216
  %222 = vmatprep.subr.mxu0 0.0
  %223 = vmatpush1.msra.mxu0 0.0
  %224 = vmatprep.subr.mxu0 0.0
  %225 = vmatpush1.msra.mxu0 0.0
  %226 = vmatprep.subr.mxu0 0.0
  %227 = vmatpush1.msra.mxu0 0.0
  %228 = vmatprep.subr.mxu0 0.0
  %229 = vmatpush1.msra.mxu0 0.0
  %230 = vmatprep.subr.mxu0 0.0
  %231 = vmatpush1.msra.mxu0 0.0
  %232 = vmatprep.subr.mxu0 0.0
  %233 = vmatpush1.msra.mxu0 0.0
  %234 = vmatprep.subr.mxu0 0.0
  %235 = vmatpush1.msra.mxu0 0.0
  %236 = vmatprep.subr.mxu0 0.0
  %237 = vmatpush1.msra.mxu0 0.0
  %238 = vmatprep.subr.mxu0 0.0
  %239 = vmatpush1.msra.mxu0 0.0
  %240 = vmatprep.subr.mxu0 0.0
  %241 = vmatpush1.msra.mxu0 0.0
  %242 = vmatprep.subr.mxu0 0.0
  %243 = vmatpush1.msra.mxu0 0.0
  %244 = vmatprep.subr.mxu0 0.0
  %245 = vmatpush1.msra.mxu0 0.0
  %246 = vmatprep.subr.mxu0 0.0
  %247 = vmatpush1.msra.mxu0 0.0
  %248 = vmatprep.subr.mxu0 0.0
  %249 = vmatpush1.msra.mxu0 0.0
  %250 = vmatprep.subr.mxu0 0.0
  %251 = vmatpush1.msra.mxu0 0.0
  %252 = vmatprep.subr.mxu0 0.0
  %253 = vmatpush1.msra.mxu0 0.0
  %254 = vmatprep.subr.mxu0 0.0
  %255 = vmatpush1.msra.mxu0 0.0
  %256 = vmatprep.subr.mxu0 0.0
  %257 = vmatpush1.msra.mxu0 0.0
  %258 = vmatprep.subr.mxu0 0.0
  %259 = vmatpush1.msra.mxu0 0.0
  %260 = vmatprep.subr.mxu0 0.0
  %261 = vmatpush1.msra.mxu0 0.0
  %262 = vmatprep.subr.mxu0 0.0
  %263 = vmatpush1.msra.mxu0 0.0
  %264 = vmatprep.subr.mxu0 0.0
  %265 = vmatpush1.msra.mxu0 0.0
  %266 = vmatprep.subr.mxu0 0.0
  %267 = vmatpush1.msra.mxu0 0.0
  %268 = vmatprep.subr.mxu0 0.0
  %269 = vmatpush1.msra.mxu0 0.0
  %270 = vmatprep.subr.mxu0 0.0
  %271 = vmatpush1.msra.mxu0 0.0
  %272 = vmatprep.subr.mxu0 0.0
  %273 = vmatpush1.msra.mxu0 0.0
  %274 = vmatprep.subr.mxu0 0.0
  %275 = vmatpush1.msra.mxu0 0.0
  %276 = vmatprep.subr.mxu0 0.0
  %277 = vmatpush1.msra.mxu0 0.0
  %278 = vmatprep.subr.mxu0 0.0
  %279 = vmatpush1.msra.mxu0 0.0
  %280 = vmatprep.subr.mxu0 0.0
  %281 = vmatpush1.msra.mxu0 0.0
  %282 = vmatprep.mubr.f32.mxu0 0.0
  %283 = vmatmul.mubr.f32.gmra.mrb[0].mxu0 %v212
  %v284 = vpop.f32.mrb[0].mxu0
  %v285 = vadd.f32 %v208, %v284
  %v286 = vpop.f32.mrb[0].mxu0
  %287 = vdwg.mxu0
  %288 = vst [vmem:[%s7] sm:$0xff] %v285
  // Predicated region
  $region30: #{linear_net_forward.1} parent=0 // pred_check
    _
  $region31: #{linear_net_forward.1} parent=0 // pred_check_branch
    %290 = sbr.rel (0) target = $region33
  $region32: #{linear_net_forward.1} parent=0 // pred_region
    _
  $region33: #{linear_net_forward.1} parent=0 // pred_fallthru
    _
  // Predicated region
  $region34: #{linear_net_forward.1} parent=0 // pred_check
    _
  $region35: #{linear_net_forward.1} parent=0 // pred_check_branch
    %292 = sbr.rel (0) target = $region37
  $region36: #{linear_net_forward.1} parent=0 // pred_region
    _
  $region37: #{linear_net_forward.1} parent=0 // pred_fallthru
    _

</llo_original>
